<compile_context>
chip_gen: v7x
topology: tpu7x:2x2x1
jax: 0.10.0
libtpu: 0.0.40
codegen_flags: <defaults>
</compile_context>

<pallas_src>
import math

import jax
import jax.numpy as jnp
from jax.experimental import pallas as pl
from jax.experimental.pallas import tpu as pltpu


def _make_siren_kernel(num_stages, sin_flags):
    """Kernel over fused affine stages in the transposed (feature-major) problem.

    Ref order:
      xT_ref (theta_in, tm),
      [W_s (d_out, d_in), b_s (d_out, 1)] * num_stages,
      oT_ref (theta_out, tm)
    Each stage: h <- W_s @ h + b_s ; optionally h <- sin(h).
    """

    def kernel(*refs):
        h = refs[0][...]
        o_ref = refs[-1]
        for s in range(num_stages):
            w = refs[1 + 2 * s][...]
            b = refs[2 + 2 * s][...]
            h = jnp.dot(w, h, preferred_element_type=jnp.float32) + b
            if sin_flags[s]:
                h = jnp.sin(h)          # EUP; w0 already folded into (w, b)
        o_ref[...] = h.astype(o_ref.dtype)

    return kernel


def _fuse_params(phi, layer_params, last_params, *, w0s, acts, last_w0,
                 last_act):
    """Fold scalars and compose adjacent affine layers at prep time.

    Returns a list of fused stages [W, b, sin_after] in feature-major layout
    (W: (out, in), b: (out, 1)).  phi[i] is folded forward into layer i+1's
    weight; w0 is folded into the layer's own (W, b) when a sin() remains.
    Composing adjacent affine stages only reassociates f32 sums.
    """
    phi = jnp.asarray(phi, jnp.float32)
    stages = []
    prev_phi = jnp.float32(1.0)          # phi of the previous layer, folded forward
    for i, (w, b) in enumerate(layer_params):
        w = jnp.asarray(w, jnp.float32)
        b = jnp.asarray(b, jnp.float32).reshape(-1, 1)
        scale = jnp.float32(w0s[i]) if acts[i] else jnp.float32(1.0)
        # sin(w0 * (W (phi_prev h) + b)) == sin((w0 phi_prev W) h + (w0 b))
        stages.append([(scale * prev_phi) * w, scale * b, bool(acts[i])])
        prev_phi = phi[i]
    wl = jnp.asarray(last_params[0], jnp.float32)
    bl = jnp.asarray(last_params[1], jnp.float32).reshape(-1, 1)
    scale = jnp.float32(last_w0) if last_act else jnp.float32(1.0)
    stages.append([(scale * prev_phi) * wl, scale * bl, bool(last_act)])

    # Compose consecutive affine stages when no sin sits between them.
    fused = [stages[0]]
    for w, b, s in stages[1:]:
        wp, bp, sp = fused[-1]
        if not sp:                        # previous stage ends affine -> merge
            fused[-1] = [w @ wp, w @ bp + b, s]
        else:
            fused.append([w, b, s])
    return fused


def siren_net_forward(xT, phi, layer_params, last_params, *, w0s, acts,
                      last_w0, last_act, tm=2048, core_parallel=False):
    """Feature-major forward:  xT (theta_in, N) f32  ->  yT (theta_out, N) f32.

    layer_params: list of (W, b) with W (out, in), b (out,) -- PyTorch layout.
    last_params:  (W, b) for the last layer.
    Callers holding batch-major data should produce it feature-major at the
    source; the kernel never round-trips a relayout through HBM.
    """
    theta_in, N = xT.shape
    tm = min(tm, N)
    assert N % tm == 0, "batch must be divisible by the tile"
    assert tm % 128 == 0 or tm == N, "tm must be a multiple of 128 (lane dim)"

    fused = _fuse_params(phi, layer_params, last_params, w0s=w0s, acts=acts,
                         last_w0=last_w0, last_act=last_act)
    flat_params, sin_flags = [], []
    for w, b, s in fused:
        flat_params += [w, b]
        sin_flags.append(s)
    theta_out = fused[-1][0].shape[0]

    kernel = _make_siren_kernel(len(fused), tuple(sin_flags))

    in_specs = [
        # x^T tiled over the batch (lane) dim; feature dim whole on sublanes.
        pl.BlockSpec((theta_in, tm), lambda i: (0, i)),
    ]
    # Weights / biases: tiny, grid-invariant -> whole & resident in VMEM,
    # single copy (no pipeliner double-buffering).
    in_specs += [pl.BlockSpec(memory_space=pltpu.MemorySpace.VMEM)
                 for _ in flat_params]
    out_spec = pl.BlockSpec((theta_out, tm), lambda i: (0, i))

    # Advisory cost for XLA scheduling.
    stage_dims = [(w.shape[1], w.shape[0]) for w, _, _ in fused]
    flops = 2 * N * sum(din * dout for din, dout in stage_dims)
    transcendentals = N * sum(dout for (_, dout), s in zip(stage_dims, sin_flags) if s)
    bytes_accessed = 4 * (int(xT.size) + N * theta_out
                          + sum(int(p.size) for p in flat_params))
    cost = pl.CostEstimate(flops=int(flops),
                           transcendentals=int(transcendentals),
                           bytes_accessed=int(bytes_accessed))

    # TODO(synk): on v7x pass core_parallel=True (and keep N // tm >= 2) so the
    # grid is sharded across both TensorCores; plain PARALLEL is correct on
    # every generation but does not split work on multi-TC chips.
    sem = pltpu.CORE_PARALLEL if core_parallel else pltpu.PARALLEL

    yT = pl.pallas_call(
        kernel,
        out_shape=jax.ShapeDtypeStruct((theta_out, N), jnp.float32),
        grid=(N // tm,),
        in_specs=in_specs,
        out_specs=out_spec,
        compiler_params=pltpu.CompilerParams(dimension_semantics=(sem,)),
        cost_estimate=cost,
    )(xT, *flat_params)
    return yT


def siren_net_reference(xT, phi, layer_params, last_params, *, w0s, acts,
                        last_w0, last_act):
    """Pure-JAX reference, literal transcription of the PyTorch forward."""
    h = xT.T
    for i, (w, b) in enumerate(layer_params):
        h = h @ w.T + b
        if acts[i]:
            h = jnp.sin(w0s[i] * h)
        h = h * phi[i]
    w, b = last_params
    y = h @ w.T + b
    if last_act:
        y = jnp.sin(last_w0 * y)
    return y.T


if __name__ == "__main__":
    # Feature widths consistent with the module; N sized so tm = N/2 keeps a
    # 2-step grid (usable by CORE_PARALLEL on v7x) with lane-dense tiles.
    theta_in, theta_hidden, theta_out = 16, 32, 8
    depth = 3
    N = 2048
    tm = N // 2
    w0, w0_initial, c = 1.0, 30.0, 6.0

    key = jax.random.PRNGKey(0)
    keys = jax.random.split(key, 2 * (depth + 1) + 2)

    # Deterministic synthetic parameters (PyTorch Linear layout: W (out, in)).
    layer_params = []
    dims = [(theta_in, theta_hidden)] + [(theta_hidden, theta_hidden)] * (depth - 1)
    stds = [1.0 / theta_in] + [math.sqrt(c / theta_hidden) / w0] * (depth - 1)
    for li, ((din, dout), std) in enumerate(zip(dims, stds)):
        W = std * jax.random.normal(keys[2 * li], (dout, din), jnp.float32)
        b = 0.01 * jax.random.normal(keys[2 * li + 1], (dout,), jnp.float32)
        layer_params.append((W, b))
    Wl = (1.0 / theta_hidden) * jax.random.normal(
        keys[2 * depth], (theta_out, theta_hidden), jnp.float32)
    bl = 0.01 * jax.random.normal(keys[2 * depth + 1], (theta_out,), jnp.float32)
    last_params = (Wl, bl)

    # Feature-major input: (theta_in, N) -- no HBM transpose anywhere.
    xT = jax.random.normal(keys[-2], (theta_in, N), jnp.float32)
    phi = jax.random.uniform(keys[-1], (depth,), jnp.float32, 0.5, 1.5)
    w0s = [w0_initial] + [w0] * (depth - 1)

    # --- default construction: all Identity -> single fused matmul ----------
    acts = [False] * depth
    out = siren_net_forward(xT, phi, layer_params, last_params,
                            w0s=w0s, acts=acts, last_w0=w0, last_act=False,
                            tm=tm)
    out = jax.block_until_ready(out)
    ref = siren_net_reference(xT, phi, layer_params, last_params,
                              w0s=w0s, acts=acts, last_w0=w0, last_act=False)
    assert out.shape == (theta_out, N)
    assert jnp.allclose(out, ref, rtol=1e-4, atol=1e-4), "mismatch (identity path)"

    # --- all-sine instantiation (per-layer stages, exercises the EUP) -------
    acts_sin = [True] * depth
    out_s = siren_net_forward(xT, phi, layer_params, last_params,
                              w0s=w0s, acts=acts_sin, last_w0=w0, last_act=True,
                              tm=tm)
    out_s = jax.block_until_ready(out_s)
    ref_s = siren_net_reference(xT, phi, layer_params, last_params,
                                w0s=w0s, acts=acts_sin, last_w0=w0, last_act=True)
    assert jnp.allclose(out_s, ref_s, rtol=1e-3, atol=1e-3), "mismatch (sine path)"

    # --- mixed instantiation (exercises partial affine fusion) --------------
    acts_mix = [True, False, True]
    out_m = siren_net_forward(xT, phi, layer_params, last_params,
                              w0s=w0s, acts=acts_mix, last_w0=w0, last_act=False,
                              tm=tm)
    out_m = jax.block_until_ready(out_m)
    ref_m = siren_net_reference(xT, phi, layer_params, last_params,
                                w0s=w0s, acts=acts_mix, last_w0=w0, last_act=False)
    assert jnp.allclose(out_m, ref_m, rtol=1e-3, atol=1e-3), "mismatch (mixed path)"

    print("KERNEL_OK")
</pallas_src>

<mosaic_0001>
module attributes {stable_mosaic.version = 11 : i64} {
  func.func @kernel(%arg0: i32, %arg1: memref<16x1024xf32, #tpu.memory_space<vmem>>, %arg2: memref<8x16xf32, #tpu.memory_space<vmem>>, %arg3: memref<8x1xf32, #tpu.memory_space<vmem>>, %arg4: memref<8x1024xf32, #tpu.memory_space<vmem>>) attributes {dimension_semantics = [#tpu.dimension_semantics<parallel>], iteration_bounds = array<i64: 2>, scalar_prefetch = 0 : i64, scratch_operands = 0 : i64, tpu.core_type = #tpu.core_type<tc>, window_params = [{transform_indices = @transform_0, window_bounds = array<i64: 16, 1024>}, {pipeline_mode = #tpu.pipeline_mode<synchronous>, transform_indices = @transform_1, window_bounds = array<i64: 8, 16>}, {pipeline_mode = #tpu.pipeline_mode<synchronous>, transform_indices = @transform_2, window_bounds = array<i64: 8, 1>}, {transform_indices = @transform_3, window_bounds = array<i64: 8, 1024>}]} {
    %c0 = arith.constant 0 : index
    %c0_0 = arith.constant 0 : index
    %0 = vector.load %arg1[%c0, %c0_0] : memref<16x1024xf32, #tpu.memory_space<vmem>>, vector<16x1024xf32>
    %c0_1 = arith.constant 0 : index
    %c0_2 = arith.constant 0 : index
    %1 = vector.load %arg2[%c0_1, %c0_2] : memref<8x16xf32, #tpu.memory_space<vmem>>, vector<8x16xf32>
    %c0_3 = arith.constant 0 : index
    %c0_4 = arith.constant 0 : index
    %2 = vector.load %arg3[%c0_3, %c0_4] : memref<8x1xf32, #tpu.memory_space<vmem>>, vector<8x1xf32>
    %cst = arith.constant dense<0.000000e+00> : vector<8x1024xf32>
    %3 = tpu.matmul %1, %0, %cst {dimension_numbers = #tpu.dot_dimension_numbers<[1], [0], [0], [1], [0, 0, 1, 1], [], []>} : vector<8x16xf32>, vector<16x1024xf32>, vector<8x1024xf32> -> vector<8x1024xf32>
    %4 = vector.broadcast %2 : vector<8x1xf32> to vector<8x1024xf32>
    %5 = arith.addf %3, %4 : vector<8x1024xf32>
    %c0_5 = arith.constant 0 : index
    %c0_6 = arith.constant 0 : index
    %6 = vector.load %arg4[%c0_5, %c0_6] : memref<8x1024xf32, #tpu.memory_space<vmem>>, vector<8x1024xf32>
    tpu.vector_store %arg4[%c0_5, %c0_6], %5 {strides = array<i32>} : memref<8x1024xf32, #tpu.memory_space<vmem>>, vector<8x1024xf32>,
    return
  }
  func.func @transform_0(%arg0: i32) -> (i32, i32) {
    %c0_i32 = arith.constant 0 : i32
    %c0_i32_0 = arith.constant 0 : i32
    return %c0_i32, %arg0 : i32, i32
  }
  func.func @transform_1(%arg0: i32) -> (i32, i32) {
    %c0_i32 = arith.constant 0 : i32
    %c0_i32_0 = arith.constant 0 : i32
    %c0_i32_1 = arith.constant 0 : i32
    return %c0_i32, %c0_i32_0 : i32, i32
  }
  func.func @transform_2(%arg0: i32) -> (i32, i32) {
    %c0_i32 = arith.constant 0 : i32
    %c0_i32_0 = arith.constant 0 : i32
    %c0_i32_1 = arith.constant 0 : i32
    return %c0_i32, %c0_i32_0 : i32, i32
  }
  func.func @transform_3(%arg0: i32) -> (i32, i32) {
    %c0_i32 = arith.constant 0 : i32
    %c0_i32_0 = arith.constant 0 : i32
    return %c0_i32, %arg0 : i32, i32
  }
}

</mosaic_0001>

<llo_original>
// kernel: tpu_custom_call.1
$region0: #{tpu_custom_call.1}
  #allocation0 [shape = 'u32[]', space=smem, size = 0x4, offset = 0x4, fixed_abs, tag = 'smem constant byte address 0x4 - core index']
  #allocation1 [shape = 'u32[144,128]{1,0:T(1,128)}', space=vmem, size = 0x12000, scoped, tag = 'internal scratch']
  %s0 = inlined_call_operand.hbm [shape: f32[16,2048], index: 0, kind: input, shape index: {}]
  %s1 = inlined_call_operand.vmem [shape: f32[8,16], index: 1, kind: input, shape index: {}]
  %s2 = inlined_call_operand.vmem [shape: f32[8,1], index: 2, kind: input, shape index: {}]
  %s3 = inlined_call_operand.hbm [shape: f32[8,2048], index: 3, kind: output, shape index: {}]
  %s4 = sld [smem:[#allocation0]]
  $region49: #{tpu_custom_call.1} parent=0
    _
  %s6 = ssub.s32 1, %s4
  %s7 = scalar_select 0, %s6, %s4
  $region1: #{tpu_custom_call.1} parent=0
    #allocation2 [shape = 'u8[131072]{0}', space=vmem, size = 0x20000, scoped, tag = 'input window, operand 0']
    #allocation3 [shape = 's32[2]{0}', space=sflag, size = 0x8, scoped, tag = 'scoped memory for tpu_custom_call.1']
    #allocation4 [shape = 's32[2]{0}', space=sflag, size = 0x8, scoped, tag = 'scoped memory for tpu_custom_call.1']
    #allocation5 [shape = 'u8[65536]{0}', space=vmem, size = 0x10000, scoped, tag = 'output window, operand 0']
    %8 = vsyncpa [#allocation3], 0
    %s9 = scalar_lea.sflag [#allocation3], 1
    %10 = vsyncpa %s9, 0
    %11 = vsyncpa [#allocation4], 0
    %s12 = scalar_lea.sflag [#allocation4], 1
    %13 = vsyncpa %s12, 0
    loop: start=0, step=1, limit=4
    $region2: #{tpu_custom_call.1} parent=1 // loop_pre_header
      _
    $region3: #{tpu_custom_call.1} parent=1 // loop_header
      %s15 = sphi 0, %s19
      %p16 = scmp.ge.s32.totalorder %s15, 4
      %s25 = sphi 0, %s27
      %s28 = sphi 0, %s25
      %s29 = sphi 0, %s28
      %s45 = sphi 0, %s29
      %s49 = sphi 0, %s49
      %s51 = sphi 0, %s49
      %s52 = sphi 0, %s51
      %s66 = sphi 0, %s52
      %s70 = sphi 0, %s70
      %s72 = sphi 0, %s70
      %s73 = sphi 0, %s72
      %s87 = sphi 0, %s73
      %s93 = sphi 0, %s95
      %s96 = sphi 0, %s93
      %s97 = sphi 0, %s96
      %s113 = sphi 0, %s97
    $region4: #{tpu_custom_call.1} parent=1 // loop_header_branch
      %18 = sbr.rel (%p16) target = $region8
    $region5: #{tpu_custom_call.1} parent=1 // loop_body
      %s20 = ssub.s32 %s15, 1
      %s21 = ssub.s32 %s15, 2
      %s22 = sadd.s32 %s15, 1
      %s23 = ssub.s32 %s15, %s22
      %p24 = scmp.eq.s32.totalorder %s23, 0
      %s26 = sadd.s32 %s25, 1
      %s27 = scalar_select %p24, %s25, %s26
      %p30 = pneg %p24
      %p31 = scmp.eq.s32.totalorder %s15, 1
      %p32 = por %p30, %p31
      %p33 = scmp.ne.s32.totalorder %s25, %s28
      %p34 = scmp.eq.s32.totalorder %s15, 0
      %p35 = por %p33, %p34
      %p36 = scmp.ne.s32.totalorder %s25, %s28
      %p37 = scmp.eq.s32.totalorder %s20, 1
      %p38 = por %p36, %p37
      %p39 = scmp.ne.s32.totalorder %s28, %s29
      %p40 = scmp.eq.s32.totalorder %s20, 0
      %p41 = por %p39, %p40
      %p42 = scmp.ne.s32.totalorder %s28, %s29
      %p43 = scmp.eq.s32.totalorder %s21, 1
      %p44 = por %p42, %p43
      %p46 = scmp.ne.s32.totalorder %s29, %s45
      %p47 = scmp.eq.s32.totalorder %s21, 0
      %p48 = por %p46, %p47
      %s50 = sadd.s32 %s49, 1
      %p53 = scmp.eq.s32.totalorder %s15, 1
      %p54 = scmp.ne.s32.totalorder %s49, %s51
      %p55 = scmp.eq.s32.totalorder %s15, 0
      %p56 = por %p54, %p55
      %p57 = scmp.ne.s32.totalorder %s49, %s51
      %p58 = scmp.eq.s32.totalorder %s20, 1
      %p59 = por %p57, %p58
      %p60 = scmp.ne.s32.totalorder %s51, %s52
      %p61 = scmp.eq.s32.totalorder %s20, 0
      %p62 = por %p60, %p61
      %p63 = scmp.ne.s32.totalorder %s51, %s52
      %p64 = scmp.eq.s32.totalorder %s21, 1
      %p65 = por %p63, %p64
      %p67 = scmp.ne.s32.totalorder %s52, %s66
      %p68 = scmp.eq.s32.totalorder %s21, 0
      %p69 = por %p67, %p68
      %s71 = sadd.s32 %s70, 1
      %p74 = scmp.eq.s32.totalorder %s15, 1
      %p75 = scmp.ne.s32.totalorder %s70, %s72
      %p76 = scmp.eq.s32.totalorder %s15, 0
      %p77 = por %p75, %p76
      %p78 = scmp.ne.s32.totalorder %s70, %s72
      %p79 = scmp.eq.s32.totalorder %s20, 1
      %p80 = por %p78, %p79
      %p81 = scmp.ne.s32.totalorder %s72, %s73
      %p82 = scmp.eq.s32.totalorder %s20, 0
      %p83 = por %p81, %p82
      %p84 = scmp.ne.s32.totalorder %s72, %s73
      %p85 = scmp.eq.s32.totalorder %s21, 1
      %p86 = por %p84, %p85
      %p88 = scmp.ne.s32.totalorder %s73, %s87
      %p89 = scmp.eq.s32.totalorder %s21, 0
      %p90 = por %p88, %p89
      %s91 = ssub.s32 %s15, %s22
      %p92 = scmp.eq.s32.totalorder %s91, 0
      %s94 = sadd.s32 %s93, 1
      %s95 = scalar_select %p92, %s93, %s94
      %p98 = pneg %p92
      %p99 = scmp.eq.s32.totalorder %s15, 1
      %p100 = por %p98, %p99
      %p101 = scmp.ne.s32.totalorder %s93, %s96
      %p102 = scmp.eq.s32.totalorder %s15, 0
      %p103 = por %p101, %p102
      %p104 = scmp.ne.s32.totalorder %s93, %s96
      %p105 = scmp.eq.s32.totalorder %s20, 1
      %p106 = por %p104, %p105
      %p107 = scmp.ne.s32.totalorder %s96, %s97
      %p108 = scmp.eq.s32.totalorder %s20, 0
      %p109 = por %p107, %p108
      %p110 = scmp.ne.s32.totalorder %s96, %s97
      %p111 = scmp.eq.s32.totalorder %s21, 1
      %p112 = por %p110, %p111
      %p114 = scmp.ne.s32.totalorder %s97, %s113
      %p115 = scmp.eq.s32.totalorder %s21, 0
      %p116 = por %p114, %p115
      %p117 = scmp.le.s32.totalorder 1, %s15
      %p118 = scmp.lt.s32.totalorder %s15, 3
      %p119 = pnand %p117, %p118
      %p120 = pneg %p119
      // Predicated region
      $region9: #{tpu_custom_call.1} parent=5 // pred_check
        _
      $region10: #{tpu_custom_call.1} parent=5 // pred_check_branch
        %122 = sbr.rel (%p119) target = $region12
      $region11: #{tpu_custom_call.1} parent=5 // pred_region
        %s123 = ssub.s32 %s15, 1
        // Predicated region
        $region13: #{tpu_custom_call.1} parent=11 // pred_check
          %p124 = pneg %p62
        $region14: #{tpu_custom_call.1} parent=11 // pred_check_branch
          %126 = sbr.rel (%p124) target = $region16
        $region15: #{tpu_custom_call.1} parent=11 // pred_region
          _
        $region16: #{tpu_custom_call.1} parent=11 // pred_fallthru
          _
        // Predicated region
        $region17: #{tpu_custom_call.1} parent=11 // pred_check
          %p127 = pneg %p83
        $region18: #{tpu_custom_call.1} parent=11 // pred_check_branch
          %129 = sbr.rel (%p127) target = $region20
        $region19: #{tpu_custom_call.1} parent=11 // pred_region
          _
        $region20: #{tpu_custom_call.1} parent=11 // pred_fallthru
          _
      $region12: #{tpu_custom_call.1} parent=5 // pred_fallthru
        _
      %p130 = scmp.lt.s32.totalorder %s15, 2
      // Predicated region
      $region21: #{tpu_custom_call.1} parent=5 // pred_check
        %p131 = pneg %p130
      $region22: #{tpu_custom_call.1} parent=5 // pred_check_branch
        %133 = sbr.rel (%p131) target = $region24
      $region23: #{tpu_custom_call.1} parent=5 // pred_region
        // Predicated region
        $region25: #{tpu_custom_call.1} parent=23 // pred_check
          %p134 = pneg %p35
        $region26: #{tpu_custom_call.1} parent=23 // pred_check_branch
          %136 = sbr.rel (%p134) target = $region28
        $region27: #{tpu_custom_call.1} parent=23 // pred_region
          %s137 = sand.u32 %s25, 1
          %s138 = scalar_lea.sflag [#allocation3], %s137
          %s139 = sand.u32 %s25, 1
          %s140 = smul.addr %s139, 128
          %s141 = scalar_lea.vmem [#allocation2], %s140
          %s142 = smul.u32 8, %s15
          %s144 = ssub.s32 2048, 2048
          %145 = vsyncadd %s138, %s144
          %s146 = smul.addr %s142, 128
          %s147 = scalar_lea.hbm %s0, %s146
          %s148 = sshll.u32 %s141, 4
          %s149 = int_to_ptr.vmem [resolvable:$true] %s148
          %154 = dma.hbm_to_vmem [thread:$0]  %s147, 2048, %s149, %s138, 2048, 1024, 64
        $region28: #{tpu_custom_call.1} parent=23 // pred_fallthru
          _
      $region24: #{tpu_custom_call.1} parent=5 // pred_fallthru
        _
      %p155 = scmp.le.s32.totalorder 1, %s15
      %p156 = scmp.lt.s32.totalorder %s15, 3
      %p157 = pnand %p155, %p156
      %p158 = pneg %p157
      // Predicated region
      $region29: #{tpu_custom_call.1} parent=5 // pred_check
        _
      $region30: #{tpu_custom_call.1} parent=5 // pred_check_branch
        %160 = sbr.rel (%p157) target = $region32
      $region31: #{tpu_custom_call.1} parent=5 // pred_region
        %s161 = ssub.s32 %s15, 1
        %s162 = sand.u32 %s28, 1
        %s163 = scalar_lea.sflag [#allocation3], %s162
        %s164 = sand.u32 %s28, 1
        %s165 = smul.addr %s164, 128
        %s166 = scalar_lea.vmem [#allocation2], %s165
        // Predicated region
        $region33: #{tpu_custom_call.1} parent=31 // pred_check
          %p167 = pneg %p41
        $region34: #{tpu_custom_call.1} parent=31 // pred_check_branch
          %169 = sbr.rel (%p167) target = $region36
        $region35: #{tpu_custom_call.1} parent=31 // pred_region
          %170 = dma.done %s163, 2048
        $region36: #{tpu_custom_call.1} parent=31 // pred_fallthru
          _
        %s171 = sand.u32 %s28, 1
        %s172 = scalar_lea.sflag [#allocation3], %s171
        %s173 = sand.u32 %s28, 1
        %s174 = smul.addr %s173, 128
        %s175 = scalar_lea.vmem [#allocation2], %s174
        %p176 = pneg %p41
        %p177 = pneg %p38
        %p178 = pneg %p62
        %p179 = pneg %p59
        %p180 = pneg %p83
        %p181 = pneg %p80
        %p182 = pneg %p109
        %p183 = pneg %p106
        %s184 = sand.u32 %s96, 1
        %s185 = scalar_lea.sflag [#allocation4], %s184
        %s186 = sand.u32 %s96, 1
        %s187 = smul.addr %s186, 64
        %s188 = scalar_lea.vmem [#allocation5], %s187
        %s189 = smul.u32 8, %s20
        %s190 = smul.u32 8, %s20
        %v191 = vld [vmem:[%s166] sm:$0xff]
        %v192 = vld [vmem:[%s166 + $0x8] sm:$0xff]
        %v193 = vld [vmem:[%s166 + $0x10] sm:$0xff]
        %v194 = vld [vmem:[%s166 + $0x18] sm:$0xff]
        %v195 = vld [vmem:[%s166 + $0x20] sm:$0xff]
        %v196 = vld [vmem:[%s166 + $0x28] sm:$0xff]
        %v197 = vld [vmem:[%s166 + $0x30] sm:$0xff]
        %v198 = vld [vmem:[%s166 + $0x38] sm:$0xff]
        %v199 = vld [vmem:[%s166 + $0x40] sm:$0xff]
        %v200 = vld [vmem:[%s166 + $0x48] sm:$0xff]
        %v201 = vld [vmem:[%s166 + $0x50] sm:$0xff]
        %v202 = vld [vmem:[%s166 + $0x58] sm:$0xff]
        %v203 = vld [vmem:[%s166 + $0x60] sm:$0xff]
        %v204 = vld [vmem:[%s166 + $0x68] sm:$0xff]
        %v205 = vld [vmem:[%s166 + $0x70] sm:$0xff]
        %v206 = vld [vmem:[%s166 + $0x78] sm:$0xff]
        %v207 = vld [vmem:[%s1] sm:$0xff]
        %v208 = vld [vmem:[%s2] sm:$0xff]
        %210 = vset.pattern.permute.xlu0 0
        %211 = vperm.xlu0 %210, %v208
        %v212 = vpop.permute.xlu0 %211
        %vm214 = vcmask 130048
        %v216 = vsel %vm214, %v207, 0
        %218 = vmatprep.subr.mxu0 %v192
        %219 = vmatpush1.msra.mxu0 %v191
        %220 = vmatprep.subr.mxu0 %v200
        %221 = vmatpush1.msra.mxu0 %v199
        %222 = vmatprep.subr.mxu0 0.0
        %223 = vmatpush1.msra.mxu0 0.0
        %224 = vmatprep.subr.mxu0 0.0
        %225 = vmatpush1.msra.mxu0 0.0
        %226 = vmatprep.subr.mxu0 0.0
        %227 = vmatpush1.msra.mxu0 0.0
        %228 = vmatprep.subr.mxu0 0.0
        %229 = vmatpush1.msra.mxu0 0.0
        %230 = vmatprep.subr.mxu0 0.0
        %231 = vmatpush1.msra.mxu0 0.0
        %232 = vmatprep.subr.mxu0 0.0
        %233 = vmatpush1.msra.mxu0 0.0
        %234 = vmatprep.subr.mxu0 0.0
        %235 = vmatpush1.msra.mxu0 0.0
        %236 = vmatprep.subr.mxu0 0.0
        %237 = vmatpush1.msra.mxu0 0.0
        %238 = vmatprep.subr.mxu0 0.0
        %239 = vmatpush1.msra.mxu0 0.0
        %240 = vmatprep.subr.mxu0 0.0
        %241 = vmatpush1.msra.mxu0 0.0
        %242 = vmatprep.subr.mxu0 0.0
        %243 = vmatpush1.msra.mxu0 0.0
        %244 = vmatprep.subr.mxu0 0.0
        %245 = vmatpush1.msra.mxu0 0.0
        %246 = vmatprep.subr.mxu0 0.0
        %247 = vmatpush1.msra.mxu0 0.0
        %248 = vmatprep.subr.mxu0 0.0
        %249 = vmatpush1.msra.mxu0 0.0
        %250 = vmatprep.subr.mxu0 0.0
        %251 = vmatpush1.msra.mxu0 0.0
        %252 = vmatprep.subr.mxu0 0.0
        %253 = vmatpush1.msra.mxu0 0.0
        %254 = vmatprep.subr.mxu0 0.0
        %255 = vmatpush1.msra.mxu0 0.0
        %256 = vmatprep.subr.mxu0 0.0
        %257 = vmatpush1.msra.mxu0 0.0
        %258 = vmatprep.subr.mxu0 0.0
        %259 = vmatpush1.msra.mxu0 0.0
        %260 = vmatprep.subr.mxu0 0.0
        %261 = vmatpush1.msra.mxu0 0.0
        %262 = vmatprep.subr.mxu0 0.0
        %263 = vmatpush1.msra.mxu0 0.0
        %264 = vmatprep.subr.mxu0 0.0
        %265 = vmatpush1.msra.mxu0 0.0
        %266 = vmatprep.subr.mxu0 0.0
        %267 = vmatpush1.msra.mxu0 0.0
        %268 = vmatprep.subr.mxu0 0.0
        %269 = vmatpush1.msra.mxu0 0.0
        %270 = vmatprep.subr.mxu0 0.0
        %271 = vmatpush1.msra.mxu0 0.0
        %272 = vmatprep.subr.mxu0 0.0
        %273 = vmatpush1.msra.mxu0 0.0
        %274 = vmatprep.subr.mxu0 0.0
        %275 = vmatpush1.msra.mxu0 0.0
        %276 = vmatprep.subr.mxu0 0.0
        %277 = vmatpush1.msra.mxu0 0.0
        %278 = vmatprep.subr.mxu0 0.0
        %279 = vmatpush1.msra.mxu0 0.0
        %280 = vmatprep.subr.mxu0 0.0
        %281 = vmatpush1.msra.mxu0 0.0
        %282 = vmatprep.mubr.f32.mxu0 0.0
        %283 = vmatmul.mubr.f32.gmra.mrb[0].mxu0 %v216
        %v284 = vpop.f32.mrb[0].mxu0
        %v285 = vadd.f32 %v212, %v284
        %v286 = vpop.f32.mrb[0].mxu0
        %v287 = vadd.f32 %v212, %v286
        %288 = vdwg.mxu0
        %289 = vmatprep.subr.mxu0 %v194
        %290 = vmatpush1.msra.mxu0 %v193
        %291 = vmatprep.subr.mxu0 %v202
        %292 = vmatpush1.msra.mxu0 %v201
        %293 = vmatprep.subr.mxu0 0.0
        %294 = vmatpush1.msra.mxu0 0.0
        %295 = vmatprep.subr.mxu0 0.0
        %296 = vmatpush1.msra.mxu0 0.0
        %297 = vmatprep.subr.mxu0 0.0
        %298 = vmatpush1.msra.mxu0 0.0
        %299 = vmatprep.subr.mxu0 0.0
        %300 = vmatpush1.msra.mxu0 0.0
        %301 = vmatprep.subr.mxu0 0.0
        %302 = vmatpush1.msra.mxu0 0.0
        %303 = vmatprep.subr.mxu0 0.0
        %304 = vmatpush1.msra.mxu0 0.0
        %305 = vmatprep.subr.mxu0 0.0
        %306 = vmatpush1.msra.mxu0 0.0
        %307 = vmatprep.subr.mxu0 0.0
        %308 = vmatpush1.msra.mxu0 0.0
        %309 = vmatprep.subr.mxu0 0.0
        %310 = vmatpush1.msra.mxu0 0.0
        %311 = vmatprep.subr.mxu0 0.0
        %312 = vmatpush1.msra.mxu0 0.0
        %313 = vmatprep.subr.mxu0 0.0
        %314 = vmatpush1.msra.mxu0 0.0
        %315 = vmatprep.subr.mxu0 0.0
        %316 = vmatpush1.msra.mxu0 0.0
        %317 = vmatprep.subr.mxu0 0.0
        %318 = vmatpush1.msra.mxu0 0.0
        %319 = vmatprep.subr.mxu0 0.0
        %320 = vmatpush1.msra.mxu0 0.0
        %321 = vmatprep.subr.mxu0 0.0
        %322 = vmatpush1.msra.mxu0 0.0
        %323 = vmatprep.subr.mxu0 0.0
        %324 = vmatpush1.msra.mxu0 0.0
        %325 = vmatprep.subr.mxu0 0.0
        %326 = vmatpush1.msra.mxu0 0.0
        %327 = vmatprep.subr.mxu0 0.0
        %328 = vmatpush1.msra.mxu0 0.0
        %329 = vmatprep.subr.mxu0 0.0
        %330 = vmatpush1.msra.mxu0 0.0
        %331 = vmatprep.subr.mxu0 0.0
        %332 = vmatpush1.msra.mxu0 0.0
        %333 = vmatprep.subr.mxu0 0.0
        %334 = vmatpush1.msra.mxu0 0.0
        %335 = vmatprep.subr.mxu0 0.0
        %336 = vmatpush1.msra.mxu0 0.0
        %337 = vmatprep.subr.mxu0 0.0
        %338 = vmatpush1.msra.mxu0 0.0
        %339 = vmatprep.subr.mxu0 0.0
        %340 = vmatpush1.msra.mxu0 0.0
        %341 = vmatprep.subr.mxu0 0.0
        %342 = vmatpush1.msra.mxu0 0.0
        %343 = vmatprep.subr.mxu0 0.0
        %344 = vmatpush1.msra.mxu0 0.0
        %345 = vmatprep.subr.mxu0 0.0
        %346 = vmatpush1.msra.mxu0 0.0
        %347 = vmatprep.subr.mxu0 0.0
        %348 = vmatpush1.msra.mxu0 0.0
        %349 = vmatprep.subr.mxu0 0.0
        %350 = vmatpush1.msra.mxu0 0.0
        %351 = vmatprep.subr.mxu0 0.0
        %352 = vmatpush1.msra.mxu0 0.0
        %353 = vmatprep.mubr.f32.mxu0 0.0
        %354 = vmatmul.mubr.f32.gmra.mrb[0].mxu0 %v216
        %v355 = vpop.f32.mrb[0].mxu0
        %v356 = vadd.f32 %v212, %v355
        %v357 = vpop.f32.mrb[0].mxu0
        %v358 = vadd.f32 %v212, %v357
        %359 = vdwg.mxu0
        %360 = vmatprep.subr.mxu0 %v196
        %361 = vmatpush1.msra.mxu0 %v195
        %362 = vmatprep.subr.mxu0 %v204
        %363 = vmatpush1.msra.mxu0 %v203
        %364 = vmatprep.subr.mxu0 0.0
        %365 = vmatpush1.msra.mxu0 0.0
        %366 = vmatprep.subr.mxu0 0.0
        %367 = vmatpush1.msra.mxu0 0.0
        %368 = vmatprep.subr.mxu0 0.0
        %369 = vmatpush1.msra.mxu0 0.0
        %370 = vmatprep.subr.mxu0 0.0
        %371 = vmatpush1.msra.mxu0 0.0
        %372 = vmatprep.subr.mxu0 0.0
        %373 = vmatpush1.msra.mxu0 0.0
        %374 = vmatprep.subr.mxu0 0.0
        %375 = vmatpush1.msra.mxu0 0.0
        %376 = vmatprep.subr.mxu0 0.0
        %377 = vmatpush1.msra.mxu0 0.0
        %378 = vmatprep.subr.mxu0 0.0
        %379 = vmatpush1.msra.mxu0 0.0
        %380 = vmatprep.subr.mxu0 0.0
        %381 = vmatpush1.msra.mxu0 0.0
        %382 = vmatprep.subr.mxu0 0.0
        %383 = vmatpush1.msra.mxu0 0.0
        %384 = vmatprep.subr.mxu0 0.0
        %385 = vmatpush1.msra.mxu0 0.0
        %386 = vmatprep.subr.mxu0 0.0
        %387 = vmatpush1.msra.mxu0 0.0
        %388 = vmatprep.subr.mxu0 0.0
        %389 = vmatpush1.msra.mxu0 0.0
        %390 = vmatprep.subr.mxu0 0.0
        %391 = vmatpush1.msra.mxu0 0.0
        %392 = vmatprep.subr.mxu0 0.0
        %393 = vmatpush1.msra.mxu0 0.0
        %394 = vmatprep.subr.mxu0 0.0
        %395 = vmatpush1.msra.mxu0 0.0
        %396 = vmatprep.subr.mxu0 0.0
        %397 = vmatpush1.msra.mxu0 0.0
        %398 = vmatprep.subr.mxu0 0.0
        %399 = vmatpush1.msra.mxu0 0.0
        %400 = vmatprep.subr.mxu0 0.0
        %401 = vmatpush1.msra.mxu0 0.0
        %402 = vmatprep.subr.mxu0 0.0
        %403 = vmatpush1.msra.mxu0 0.0
        %404 = vmatprep.subr.mxu0 0.0
        %405 = vmatpush1.msra.mxu0 0.0
        %406 = vmatprep.subr.mxu0 0.0
        %407 = vmatpush1.msra.mxu0 0.0
        %408 = vmatprep.subr.mxu0 0.0
        %409 = vmatpush1.msra.mxu0 0.0
        %410 = vmatprep.subr.mxu0 0.0
        %411 = vmatpush1.msra.mxu0 0.0
        %412 = vmatprep.subr.mxu0 0.0
        %413 = vmatpush1.msra.mxu0 0.0
        %414 = vmatprep.subr.mxu0 0.0
        %415 = vmatpush1.msra.mxu0 0.0
        %416 = vmatprep.subr.mxu0 0.0
        %417 = vmatpush1.msra.mxu0 0.0
        %418 = vmatprep.subr.mxu0 0.0
        %419 = vmatpush1.msra.mxu0 0.0
        %420 = vmatprep.subr.mxu0 0.0
        %421 = vmatpush1.msra.mxu0 0.0
        %422 = vmatprep.subr.mxu0 0.0
        %423 = vmatpush1.msra.mxu0 0.0
        %424 = vmatprep.mubr.f32.mxu0 0.0
        %425 = vmatmul.mubr.f32.gmra.mrb[0].mxu0 %v216
        %v426 = vpop.f32.mrb[0].mxu0
        %v427 = vadd.f32 %v212, %v426
        %v428 = vpop.f32.mrb[0].mxu0
        %v429 = vadd.f32 %v212, %v428
        %430 = vdwg.mxu0
        %431 = vmatprep.subr.mxu0 %v198
        %432 = vmatpush1.msra.mxu0 %v197
        %433 = vmatprep.subr.mxu0 %v206
        %434 = vmatpush1.msra.mxu0 %v205
        %435 = vmatprep.subr.mxu0 0.0
        %436 = vmatpush1.msra.mxu0 0.0
        %437 = vmatprep.subr.mxu0 0.0
        %438 = vmatpush1.msra.mxu0 0.0
        %439 = vmatprep.subr.mxu0 0.0
        %440 = vmatpush1.msra.mxu0 0.0
        %441 = vmatprep.subr.mxu0 0.0
        %442 = vmatpush1.msra.mxu0 0.0
        %443 = vmatprep.subr.mxu0 0.0
        %444 = vmatpush1.msra.mxu0 0.0
        %445 = vmatprep.subr.mxu0 0.0
        %446 = vmatpush1.msra.mxu0 0.0
        %447 = vmatprep.subr.mxu0 0.0
        %448 = vmatpush1.msra.mxu0 0.0
        %449 = vmatprep.subr.mxu0 0.0
        %450 = vmatpush1.msra.mxu0 0.0
        %451 = vmatprep.subr.mxu0 0.0
        %452 = vmatpush1.msra.mxu0 0.0
        %453 = vmatprep.subr.mxu0 0.0
        %454 = vmatpush1.msra.mxu0 0.0
        %455 = vmatprep.subr.mxu0 0.0
        %456 = vmatpush1.msra.mxu0 0.0
        %457 = vmatprep.subr.mxu0 0.0
        %458 = vmatpush1.msra.mxu0 0.0
        %459 = vmatprep.subr.mxu0 0.0
        %460 = vmatpush1.msra.mxu0 0.0
        %461 = vmatprep.subr.mxu0 0.0
        %462 = vmatpush1.msra.mxu0 0.0
        %463 = vmatprep.subr.mxu0 0.0
        %464 = vmatpush1.msra.mxu0 0.0
        %465 = vmatprep.subr.mxu0 0.0
        %466 = vmatpush1.msra.mxu0 0.0
        %467 = vmatprep.subr.mxu0 0.0
        %468 = vmatpush1.msra.mxu0 0.0
        %469 = vmatprep.subr.mxu0 0.0
        %470 = vmatpush1.msra.mxu0 0.0
        %471 = vmatprep.subr.mxu0 0.0
        %472 = vmatpush1.msra.mxu0 0.0
        %473 = vmatprep.subr.mxu0 0.0
        %474 = vmatpush1.msra.mxu0 0.0
        %475 = vmatprep.subr.mxu0 0.0
        %476 = vmatpush1.msra.mxu0 0.0
        %477 = vmatprep.subr.mxu0 0.0
        %478 = vmatpush1.msra.mxu0 0.0
        %479 = vmatprep.subr.mxu0 0.0
        %480 = vmatpush1.msra.mxu0 0.0
        %481 = vmatprep.subr.mxu0 0.0
        %482 = vmatpush1.msra.mxu0 0.0
        %483 = vmatprep.subr.mxu0 0.0
        %484 = vmatpush1.msra.mxu0 0.0
        %485 = vmatprep.subr.mxu0 0.0
        %486 = vmatpush1.msra.mxu0 0.0
        %487 = vmatprep.subr.mxu0 0.0
        %488 = vmatpush1.msra.mxu0 0.0
        %489 = vmatprep.subr.mxu0 0.0
        %490 = vmatpush1.msra.mxu0 0.0
        %491 = vmatprep.subr.mxu0 0.0
        %492 = vmatpush1.msra.mxu0 0.0
        %493 = vmatprep.subr.mxu0 0.0
        %494 = vmatpush1.msra.mxu0 0.0
        %495 = vmatprep.mubr.f32.mxu0 0.0
        %496 = vmatmul.mubr.f32.gmra.mrb[0].mxu0 %v216
        %v497 = vpop.f32.mrb[0].mxu0
        %v498 = vadd.f32 %v212, %v497
        %v499 = vpop.f32.mrb[0].mxu0
        %v500 = vadd.f32 %v212, %v499
        %501 = vdwg.mxu0
        %502 = vst [vmem:[%s188] sm:$0xff] %v285
        %503 = vst [vmem:[%s188 + $0x8] sm:$0xff] %v287
        %504 = vst [vmem:[%s188 + $0x10] sm:$0xff] %v356
        %505 = vst [vmem:[%s188 + $0x18] sm:$0xff] %v358
        %506 = vst [vmem:[%s188 + $0x20] sm:$0xff] %v427
        %507 = vst [vmem:[%s188 + $0x28] sm:$0xff] %v429
        %508 = vst [vmem:[%s188 + $0x30] sm:$0xff] %v498
        %509 = vst [vmem:[%s188 + $0x38] sm:$0xff] %v500
        %s510 = sand.u32 %s96, 1
        %s511 = scalar_lea.sflag [#allocation4], %s510
        %s512 = sand.u32 %s96, 1
        %s513 = smul.addr %s512, 64
        %s514 = scalar_lea.vmem [#allocation5], %s513
        // Predicated region
        $region37: #{tpu_custom_call.1} parent=31 // pred_check
          %p515 = pneg %p106
        $region38: #{tpu_custom_call.1} parent=31 // pred_check_branch
          %517 = sbr.rel (%p515) target = $region40
        $region39: #{tpu_custom_call.1} parent=31 // pred_region
          %s518 = smul.u32 8, %s20
          %s520 = ssub.s32 1024, 1024
          %521 = vsyncadd %s511, %s520
          %s522 = smul.addr %s518, 128
          %s523 = scalar_lea.hbm %s3, %s522
          %s525 = sshll.u32 %s514, 4
          %s526 = int_to_ptr.vmem [resolvable:$true] %s525
          %528 = dma.vmem_to_hbm [thread:$0]  %s526, 1024, %s523, %s511
        $region40: #{tpu_custom_call.1} parent=31 // pred_fallthru
          _
      $region32: #{tpu_custom_call.1} parent=5 // pred_fallthru
        _
      %p529 = scmp.le.s32.totalorder 2, %s15
      // Predicated region
      $region41: #{tpu_custom_call.1} parent=5 // pred_check
        %p530 = pneg %p529
      $region42: #{tpu_custom_call.1} parent=5 // pred_check_branch
        %532 = sbr.rel (%p530) target = $region44
      $region43: #{tpu_custom_call.1} parent=5 // pred_region
        %s533 = ssub.s32 %s15, 2
        // Predicated region
        $region45: #{tpu_custom_call.1} parent=43 // pred_check
          %p534 = pneg %p112
        $region46: #{tpu_custom_call.1} parent=43 // pred_check_branch
          %536 = sbr.rel (%p534) target = $region48
        $region47: #{tpu_custom_call.1} parent=43 // pred_region
          %s537 = sand.u32 %s97, 1
          %s538 = scalar_lea.sflag [#allocation4], %s537
          %s539 = sand.u32 %s97, 1
          %s540 = smul.addr %s539, 64
          %s541 = scalar_lea.vmem [#allocation5], %s540
          %542 = dma.done %s538, 1024
        $region48: #{tpu_custom_call.1} parent=43 // pred_fallthru
          _
      $region44: #{tpu_custom_call.1} parent=5 // pred_fallthru
        _
    $region6: #{tpu_custom_call.1} parent=1 // loop_footer
      %s19 = sadd.s32 1, %s15
    $region7: #{tpu_custom_call.1} parent=1 // loop_footer_branch
      %14 = sbr.rel target = $region3
    $region8: #{tpu_custom_call.1} parent=1 // loop_exit
      _
    %543 = vsyncpa [#allocation3], 1
    %s544 = scalar_lea.sflag [#allocation3], 1
    %545 = vsyncpa %s544, 1
    %546 = vsyncpa [#allocation4], 1
    %s547 = scalar_lea.sflag [#allocation4], 1
    %548 = vsyncpa %s547, 1

</llo_original>
